<compile_context>
chip_gen: v5e
topology: v5e:2x2
jax: 0.10.0
libtpu: 0.0.40
codegen_flags: <defaults>
</compile_context>

<pallas_src>
import math

import jax
import jax.numpy as jnp
from jax.experimental import pallas as pl
from jax.experimental.pallas import tpu as pltpu

LEAK = 0.01
BN_EPS = 1e-5
LANES = 128  # lane width of the compact output layout


def _lrelu(x, leak=LEAK):
    return jnp.where(x >= 0, x, leak * x)


def _round_up(x, m):
    return ((x + m - 1) // m) * m


def critic_kernel(state_ref, action_ref,
                  w1_ref, b1_ref,
                  w2s_ref, w2a_ref, b2_ref,
                  w3_ref, b3_ref,
                  w4_ref, b4_ref,
                  out_ref):
    f32 = jnp.float32
    bf16 = jnp.bfloat16

    # ---- fcs1 + leaky_relu (BatchNorm already folded into w1/b1) ----
    h1 = jnp.dot(state_ref[...].astype(bf16), w1_ref[...],
                 preferred_element_type=f32) + b1_ref[...]
    h1 = _lrelu(h1)

    # ---- fc2 on cat(h1, action):
    #        h1 part      -> MXU matmul (bf16 in, f32 acc)
    #        action part  -> 4 broadcasted VPU FMAs in f32 (K=4 matmul avoided)
    h2 = jnp.dot(h1.astype(bf16), w2s_ref[...],
                 preferred_element_type=f32) + b2_ref[...]
    a = action_ref[...]                      # [tile_b, A] f32
    for k in range(a.shape[1]):              # A is static; unrolled at trace
        h2 = h2 + a[:, k:k + 1] * w2a_ref[k:k + 1, :]
    h2 = _lrelu(h2)

    # ---- fc3 + leaky_relu ----
    h3 = jnp.dot(h2.astype(bf16), w3_ref[...],
                 preferred_element_type=f32) + b3_ref[...]
    h3 = _lrelu(h3)

    # ---- fc4 head (N=1): VPU multiply + lane reduction, emitted directly as
    #      a compact lane-dense [tile_b//128, 128] block (no 128x broadcast).
    tile_b, fc3 = h3.shape
    rows = out_ref.shape[0]                  # == tile_b // 128 (layout-preserving split)
    h3r = h3.reshape(rows, LANES, fc3)
    q = jnp.sum(h3r * w4_ref[...][None, :, :], axis=-1) + b4_ref[...]
    out_ref[...] = q.astype(out_ref.dtype)


def critic_forward(state, action, params, *, tile_b=None):
    B, state_size = state.shape
    action_size = action.shape[1]
    fc1 = params["w1"].shape[1]
    fc2 = params["w2s"].shape[1]
    fc3 = params["w3"].shape[1]

    # --- BatchNorm1d train-mode stats over the TRUE batch (before padding),
    #     folded into the first linear layer (f32 fold, bf16 cast afterwards).
    mean = jnp.mean(state, axis=0, keepdims=True)
    var = jnp.mean(jnp.square(state - mean), axis=0, keepdims=True)
    bn_scale = params["gamma"] * jax.lax.rsqrt(var + BN_EPS)        # [1, S]
    bn_shift = params["beta"] - mean * bn_scale                     # [1, S]
    w1_eff = (bn_scale.reshape(-1, 1) * params["w1"]).astype(jnp.bfloat16)
    b1_eff = params["b1"] + bn_shift @ params["w1"]                 # f32

    # --- tile selection: one grid step for B <= 1024; 1024-row tiles beyond
    #     (multiple of 1024 keeps the compact output block a clean (8,128)).
    if tile_b is None:
        tile_b = min(_round_up(B, LANES), 1024)
    assert tile_b % LANES == 0
    b_pad = _round_up(B, tile_b)
    grid = b_pad // tile_b
    assert grid == 1 or (tile_b // LANES) % 8 == 0

    if b_pad != B:
        state = jnp.pad(state, ((0, b_pad - B), (0, 0)))
        action = jnp.pad(action, ((0, b_pad - B), (0, 0)))

    # bf16 weights for the MXU; biases, the action path and the head stay f32.
    w2s = params["w2s"].astype(jnp.bfloat16)
    w3 = params["w3"].astype(jnp.bfloat16)

    args = (state, action,
            w1_eff, b1_eff,
            w2s, params["w2a"], params["b2"],
            w3, params["b3"],
            params["w4_row"], params["b4"])

    def resident_spec(arr):
        nd = arr.ndim
        return pl.BlockSpec(tuple(arr.shape), lambda i, _n=nd: (0,) * _n)

    in_specs = [
        pl.BlockSpec((tile_b, state_size), lambda i: (i, 0)),
        pl.BlockSpec((tile_b, action_size), lambda i: (i, 0)),
    ] + [resident_spec(a) for a in args[2:]]

    rows_per_tile = tile_b // LANES
    out_specs = pl.BlockSpec((rows_per_tile, LANES), lambda i: (i, 0))

    flops = 2 * B * (state_size * fc1 + fc1 * fc2 + action_size * fc2
                     + fc2 * fc3 + fc3)
    bytes_accessed = (sum(int(a.size) * a.dtype.itemsize for a in args)
                      + b_pad * 4)
    cost = pl.CostEstimate(flops=int(flops), transcendentals=0,
                           bytes_accessed=int(bytes_accessed))

    out = pl.pallas_call(
        critic_kernel,
        out_shape=jax.ShapeDtypeStruct((b_pad // LANES, LANES), jnp.float32),
        grid=(grid,),
        in_specs=in_specs,
        out_specs=out_specs,
        compiler_params=pltpu.CompilerParams(
            dimension_semantics=("parallel",)),
        cost_estimate=cost,
    )(*args)

    # (r, c) in the compact layout is batch row r*128 + c.
    return out.reshape(b_pad, 1)[:B]


def init_params(key, state_size, action_size, fc1=256, fc2=128, fc3=128,
                leak=LEAK):
    """Mirrors the module's reset_parameters():
       - fcs1, fc2 weights: kaiming_normal (fan_in, leaky_relu gain)
       - fc3 weight: uniform(-0.003, 0.003)
       - fc4 weight + all biases: PyTorch Linear default uniform(+/-1/sqrt(fan_in))
       Weights stored transposed as [in, out]; fc4 weight stored as a [1, fc3]
       row for the VPU head."""
    ks = jax.random.split(key, 8)

    def kaiming_normal(k, fan_in, fan_out):
        gain = math.sqrt(2.0 / (1.0 + leak * leak))
        std = gain / math.sqrt(fan_in)
        return std * jax.random.normal(k, (fan_in, fan_out), jnp.float32)

    def default_uniform(k, shape, fan_in):
        bound = 1.0 / math.sqrt(fan_in)
        return jax.random.uniform(k, shape, jnp.float32, -bound, bound)

    cat_in = fc1 + action_size
    w2_full = kaiming_normal(ks[1], cat_in, fc2)

    return {
        "gamma": jnp.ones((1, state_size), jnp.float32),   # BN weight
        "beta": jnp.zeros((1, state_size), jnp.float32),   # BN bias
        "w1": kaiming_normal(ks[0], state_size, fc1),
        "b1": default_uniform(ks[2], (1, fc1), state_size),
        "w2s": w2_full[:fc1, :],
        "w2a": w2_full[fc1:, :],
        "b2": default_uniform(ks[3], (1, fc2), cat_in),
        "w3": jax.random.uniform(ks[4], (fc2, fc3), jnp.float32, -0.003, 0.003),
        "b3": default_uniform(ks[5], (1, fc3), fc2),
        "w4_row": default_uniform(ks[6], (1, fc3), fc3),
        "b4": default_uniform(ks[7], (1, 1), fc3),
    }


def reference_forward_f32(state, action, p):
    """Pure-JAX f32 reference of the PyTorch module (train-mode BN)."""
    mean = jnp.mean(state, axis=0, keepdims=True)
    var = jnp.mean((state - mean) ** 2, axis=0, keepdims=True)
    s = (state - mean) * jax.lax.rsqrt(var + BN_EPS) * p["gamma"] + p["beta"]
    h1 = _lrelu(s @ p["w1"] + p["b1"])
    h2 = _lrelu(h1 @ p["w2s"] + action @ p["w2a"] + p["b2"])
    h3 = _lrelu(h2 @ p["w3"] + p["b3"])
    return jnp.sum(h3 * p["w4_row"], axis=-1, keepdims=True) + p["b4"]


def reference_forward_bf16(state, action, p):
    """Reference mirroring the kernel: BN folded into W1/b1, bf16 matmul
       inputs with f32 accumulation, f32 action path and f32 head."""
    bf = jnp.bfloat16
    f32 = jnp.float32
    mean = jnp.mean(state, axis=0, keepdims=True)
    var = jnp.mean((state - mean) ** 2, axis=0, keepdims=True)
    scale = p["gamma"] * jax.lax.rsqrt(var + BN_EPS)
    shift = p["beta"] - mean * scale
    w1_eff = (scale.reshape(-1, 1) * p["w1"]).astype(bf)
    b1_eff = p["b1"] + shift @ p["w1"]
    h1 = _lrelu(jnp.dot(state.astype(bf), w1_eff,
                        preferred_element_type=f32) + b1_eff)
    h2 = _lrelu(jnp.dot(h1.astype(bf), p["w2s"].astype(bf),
                        preferred_element_type=f32)
                + action @ p["w2a"] + p["b2"])
    h3 = _lrelu(jnp.dot(h2.astype(bf), p["w3"].astype(bf),
                        preferred_element_type=f32) + p["b3"])
    return jnp.sum(h3 * p["w4_row"], axis=-1, keepdims=True) + p["b4"]


if __name__ == "__main__":
    state_size, action_size = 33, 4   # Reacher-style dims
    batch = 64                        # -> b_pad=128, tile_b=128, grid=1

    key = jax.random.PRNGKey(0)
    k_state, k_action, k_params = jax.random.split(key, 3)

    state = jax.random.normal(k_state, (batch, state_size), jnp.float32)
    action = jax.random.uniform(k_action, (batch, action_size), jnp.float32,
                                -1.0, 1.0)
    params = init_params(k_params, state_size, action_size)

    fwd = jax.jit(critic_forward)
    q = jax.block_until_ready(fwd(state, action, params))

    assert q.shape == (batch, 1)

    # Tight check against a reference matching the kernel's numerics.
    q_bf16 = reference_forward_bf16(state, action, params)
    assert jnp.allclose(q, q_bf16, atol=1e-3, rtol=1e-3), \
        float(jnp.max(jnp.abs(q - q_bf16)))

    # Loose check against the full-f32 PyTorch-equivalent math.
    q_f32 = reference_forward_f32(state, action, params)
    assert jnp.allclose(q, q_f32, atol=2e-2, rtol=2e-2), \
        float(jnp.max(jnp.abs(q - q_f32)))

    print("KERNEL_OK")
</pallas_src>

<mosaic_0001>
module attributes {stable_mosaic.version = 11 : i64} {
  func.func @critic_kernel(%arg0: i32, %arg1: memref<128x33xf32, #tpu.memory_space<vmem>>, %arg2: memref<128x4xf32, #tpu.memory_space<vmem>>, %arg3: memref<33x256xbf16, #tpu.memory_space<vmem>>, %arg4: memref<1x256xf32, #tpu.memory_space<vmem>>, %arg5: memref<256x128xbf16, #tpu.memory_space<vmem>>, %arg6: memref<4x128xf32, #tpu.memory_space<vmem>>, %arg7: memref<1x128xf32, #tpu.memory_space<vmem>>, %arg8: memref<128x128xbf16, #tpu.memory_space<vmem>>, %arg9: memref<1x128xf32, #tpu.memory_space<vmem>>, %arg10: memref<1x128xf32, #tpu.memory_space<vmem>>, %arg11: memref<1x1xf32, #tpu.memory_space<vmem>>, %arg12: memref<1x128xf32, #tpu.memory_space<vmem>>) attributes {dimension_semantics = [#tpu.dimension_semantics<parallel>], iteration_bounds = array<i64: 1>, scalar_prefetch = 0 : i64, scratch_operands = 0 : i64, tpu.core_type = #tpu.core_type<tc>, window_params = [{transform_indices = @transform_0, window_bounds = array<i64: 128, 33>}, {transform_indices = @transform_1, window_bounds = array<i64: 128, 4>}, {pipeline_mode = #tpu.pipeline_mode<synchronous>, transform_indices = @transform_2, window_bounds = array<i64: 33, 256>}, {pipeline_mode = #tpu.pipeline_mode<synchronous>, transform_indices = @transform_3, window_bounds = array<i64: 1, 256>}, {pipeline_mode = #tpu.pipeline_mode<synchronous>, transform_indices = @transform_4, window_bounds = array<i64: 256, 128>}, {pipeline_mode = #tpu.pipeline_mode<synchronous>, transform_indices = @transform_5, window_bounds = array<i64: 4, 128>}, {pipeline_mode = #tpu.pipeline_mode<synchronous>, transform_indices = @transform_6, window_bounds = array<i64: 1, 128>}, {pipeline_mode = #tpu.pipeline_mode<synchronous>, transform_indices = @transform_7, window_bounds = array<i64: 128, 128>}, {pipeline_mode = #tpu.pipeline_mode<synchronous>, transform_indices = @transform_8, window_bounds = array<i64: 1, 128>}, {pipeline_mode = #tpu.pipeline_mode<synchronous>, transform_indices = @transform_9, window_bounds = array<i64: 1, 128>}, {pipeline_mode = #tpu.pipeline_mode<synchronous>, transform_indices = @transform_10, window_bounds = array<i64: 1, 1>}, {transform_indices = @transform_11, window_bounds = array<i64: 1, 128>}]} {
    %c0 = arith.constant 0 : index
    %c0_0 = arith.constant 0 : index
    %0 = vector.load %arg1[%c0, %c0_0] : memref<128x33xf32, #tpu.memory_space<vmem>>, vector<128x33xf32>
    %1 = arith.truncf %0 : vector<128x33xf32> to vector<128x33xbf16>
    %c0_1 = arith.constant 0 : index
    %c0_2 = arith.constant 0 : index
    %2 = vector.load %arg3[%c0_1, %c0_2] : memref<33x256xbf16, #tpu.memory_space<vmem>>, vector<33x256xbf16>
    %cst = arith.constant dense<0.000000e+00> : vector<128x256xf32>
    %3 = tpu.matmul %1, %2, %cst {dimension_numbers = #tpu.dot_dimension_numbers<[1], [0], [0], [1], [0, 0, 1, 1], [], []>} : vector<128x33xbf16>, vector<33x256xbf16>, vector<128x256xf32> -> vector<128x256xf32>
    %c0_3 = arith.constant 0 : index
    %c0_4 = arith.constant 0 : index
    %4 = vector.load %arg4[%c0_3, %c0_4] : memref<1x256xf32, #tpu.memory_space<vmem>>, vector<1x256xf32>
    %5 = vector.broadcast %4 : vector<1x256xf32> to vector<128x256xf32>
    %6 = arith.addf %3, %5 : vector<128x256xf32>
    %cst_5 = arith.constant 0.000000e+00 : f32
    %7 = vector.broadcast %cst_5 : f32 to vector<128x256xf32>
    %8 = arith.cmpf oge, %6, %7 : vector<128x256xf32>
    %cst_6 = arith.constant 0.00999999977 : f32
    %9 = vector.broadcast %cst_6 : f32 to vector<128x256xf32>
    %10 = arith.mulf %9, %6 : vector<128x256xf32>
    %11 = arith.select %8, %6, %10 : vector<128x256xi1>, vector<128x256xf32>
    %12 = arith.truncf %11 : vector<128x256xf32> to vector<128x256xbf16>
    %c0_7 = arith.constant 0 : index
    %c0_8 = arith.constant 0 : index
    %13 = vector.load %arg5[%c0_7, %c0_8] : memref<256x128xbf16, #tpu.memory_space<vmem>>, vector<256x128xbf16>
    %cst_9 = arith.constant dense<0.000000e+00> : vector<128x128xf32>
    %14 = tpu.matmul %12, %13, %cst_9 {dimension_numbers = #tpu.dot_dimension_numbers<[1], [0], [0], [1], [0, 0, 1, 1], [], []>} : vector<128x256xbf16>, vector<256x128xbf16>, vector<128x128xf32> -> vector<128x128xf32>
    %c0_10 = arith.constant 0 : index
    %c0_11 = arith.constant 0 : index
    %15 = vector.load %arg7[%c0_10, %c0_11] : memref<1x128xf32, #tpu.memory_space<vmem>>, vector<1x128xf32>
    %16 = vector.broadcast %15 : vector<1x128xf32> to vector<128x128xf32>
    %17 = arith.addf %14, %16 : vector<128x128xf32>
    %c0_12 = arith.constant 0 : index
    %c0_13 = arith.constant 0 : index
    %18 = vector.load %arg2[%c0_12, %c0_13] : memref<128x4xf32, #tpu.memory_space<vmem>>, vector<128x4xf32>
    %19 = vector.extract_strided_slice %18 {offsets = [0, 0], sizes = [128, 1], strides = [1, 1]} : vector<128x4xf32> to vector<128x1xf32>
    %c0_14 = arith.constant 0 : index
    %c0_15 = arith.constant 0 : index
    %20 = vector.load %arg6[%c0_14, %c0_15] : memref<4x128xf32, #tpu.memory_space<vmem>>, vector<1x128xf32>
    %21 = vector.broadcast %19 : vector<128x1xf32> to vector<128x128xf32>
    %22 = vector.broadcast %20 : vector<1x128xf32> to vector<128x128xf32>
    %23 = arith.mulf %21, %22 : vector<128x128xf32>
    %24 = arith.addf %17, %23 : vector<128x128xf32>
    %25 = vector.extract_strided_slice %18 {offsets = [0, 1], sizes = [128, 1], strides = [1, 1]} : vector<128x4xf32> to vector<128x1xf32>
    %c1 = arith.constant 1 : index
    %c0_16 = arith.constant 0 : index
    %26 = vector.load %arg6[%c1, %c0_16] : memref<4x128xf32, #tpu.memory_space<vmem>>, vector<1x128xf32>
    %27 = vector.broadcast %25 : vector<128x1xf32> to vector<128x128xf32>
    %28 = vector.broadcast %26 : vector<1x128xf32> to vector<128x128xf32>
    %29 = arith.mulf %27, %28 : vector<128x128xf32>
    %30 = arith.addf %24, %29 : vector<128x128xf32>
    %31 = vector.extract_strided_slice %18 {offsets = [0, 2], sizes = [128, 1], strides = [1, 1]} : vector<128x4xf32> to vector<128x1xf32>
    %c2 = arith.constant 2 : index
    %c0_17 = arith.constant 0 : index
    %32 = vector.load %arg6[%c2, %c0_17] : memref<4x128xf32, #tpu.memory_space<vmem>>, vector<1x128xf32>
    %33 = vector.broadcast %31 : vector<128x1xf32> to vector<128x128xf32>
    %34 = vector.broadcast %32 : vector<1x128xf32> to vector<128x128xf32>
    %35 = arith.mulf %33, %34 : vector<128x128xf32>
    %36 = arith.addf %30, %35 : vector<128x128xf32>
    %37 = vector.extract_strided_slice %18 {offsets = [0, 3], sizes = [128, 1], strides = [1, 1]} : vector<128x4xf32> to vector<128x1xf32>
    %c3 = arith.constant 3 : index
    %c0_18 = arith.constant 0 : index
    %38 = vector.load %arg6[%c3, %c0_18] : memref<4x128xf32, #tpu.memory_space<vmem>>, vector<1x128xf32>
    %39 = vector.broadcast %37 : vector<128x1xf32> to vector<128x128xf32>
    %40 = vector.broadcast %38 : vector<1x128xf32> to vector<128x128xf32>
    %41 = arith.mulf %39, %40 : vector<128x128xf32>
    %42 = arith.addf %36, %41 : vector<128x128xf32>
    %cst_19 = arith.constant 0.000000e+00 : f32
    %43 = vector.broadcast %cst_19 : f32 to vector<128x128xf32>
    %44 = arith.cmpf oge, %42, %43 : vector<128x128xf32>
    %cst_20 = arith.constant 0.00999999977 : f32
    %45 = vector.broadcast %cst_20 : f32 to vector<128x128xf32>
    %46 = arith.mulf %45, %42 : vector<128x128xf32>
    %47 = arith.select %44, %42, %46 : vector<128x128xi1>, vector<128x128xf32>
    %48 = arith.truncf %47 : vector<128x128xf32> to vector<128x128xbf16>
    %c0_21 = arith.constant 0 : index
    %c0_22 = arith.constant 0 : index
    %49 = vector.load %arg8[%c0_21, %c0_22] : memref<128x128xbf16, #tpu.memory_space<vmem>>, vector<128x128xbf16>
    %cst_23 = arith.constant dense<0.000000e+00> : vector<128x128xf32>
    %50 = tpu.matmul %48, %49, %cst_23 {dimension_numbers = #tpu.dot_dimension_numbers<[1], [0], [0], [1], [0, 0, 1, 1], [], []>} : vector<128x128xbf16>, vector<128x128xbf16>, vector<128x128xf32> -> vector<128x128xf32>
    %c0_24 = arith.constant 0 : index
    %c0_25 = arith.constant 0 : index
    %51 = vector.load %arg9[%c0_24, %c0_25] : memref<1x128xf32, #tpu.memory_space<vmem>>, vector<1x128xf32>
    %52 = vector.broadcast %51 : vector<1x128xf32> to vector<128x128xf32>
    %53 = arith.addf %50, %52 : vector<128x128xf32>
    %cst_26 = arith.constant 0.000000e+00 : f32
    %54 = vector.broadcast %cst_26 : f32 to vector<128x128xf32>
    %55 = arith.cmpf oge, %53, %54 : vector<128x128xf32>
    %cst_27 = arith.constant 0.00999999977 : f32
    %56 = vector.broadcast %cst_27 : f32 to vector<128x128xf32>
    %57 = arith.mulf %56, %53 : vector<128x128xf32>
    %58 = arith.select %55, %53, %57 : vector<128x128xi1>, vector<128x128xf32>
    %59 = vector.shape_cast %58 : vector<128x128xf32> to vector<1x128x128xf32>
    %c0_28 = arith.constant 0 : index
    %c0_29 = arith.constant 0 : index
    %60 = vector.load %arg10[%c0_28, %c0_29] : memref<1x128xf32, #tpu.memory_space<vmem>>, vector<1x128xf32>
    %61 = vector.shape_cast %60 : vector<1x128xf32> to vector<1x1x128xf32>
    %62 = vector.broadcast %61 : vector<1x1x128xf32> to vector<1x128x128xf32>
    %63 = arith.mulf %59, %62 : vector<1x128x128xf32>
    %cst_30 = arith.constant dense<0.000000e+00> : vector<1x128xf32>
    %64 = vector.multi_reduction <add>, %63, %cst_30 [2] : vector<1x128x128xf32> to vector<1x128xf32>
    %c0_31 = arith.constant 0 : index
    %c0_32 = arith.constant 0 : index
    %65 = vector.load %arg11[%c0_31, %c0_32] : memref<1x1xf32, #tpu.memory_space<vmem>>, vector<1x1xf32>
    %66 = vector.broadcast %65 : vector<1x1xf32> to vector<1x128xf32>
    %67 = arith.addf %64, %66 : vector<1x128xf32>
    %c0_33 = arith.constant 0 : index
    %c0_34 = arith.constant 0 : index
    %68 = vector.load %arg12[%c0_33, %c0_34] : memref<1x128xf32, #tpu.memory_space<vmem>>, vector<1x128xf32>
    tpu.vector_store %arg12[%c0_33, %c0_34], %67 {strides = array<i32>} : memref<1x128xf32, #tpu.memory_space<vmem>>, vector<1x128xf32>,
    return
  }
  func.func @transform_0(%arg0: i32) -> (i32, i32) {
    %c0_i32 = arith.constant 0 : i32
    %c0_i32_0 = arith.constant 0 : i32
    return %arg0, %c0_i32 : i32, i32
  }
  func.func @transform_1(%arg0: i32) -> (i32, i32) {
    %c0_i32 = arith.constant 0 : i32
    %c0_i32_0 = arith.constant 0 : i32
    return %arg0, %c0_i32 : i32, i32
  }
  func.func @transform_2(%arg0: i32) -> (i32, i32) {
    %c0_i32 = arith.constant 0 : i32
    %c0_i32_0 = arith.constant 0 : i32
    %c0_i32_1 = arith.constant 0 : i32
    return %c0_i32, %c0_i32_0 : i32, i32
  }
  func.func @transform_3(%arg0: i32) -> (i32, i32) {
    %c0_i32 = arith.constant 0 : i32
    %c0_i32_0 = arith.constant 0 : i32
    %c0_i32_1 = arith.constant 0 : i32
    return %c0_i32, %c0_i32_0 : i32, i32
  }
  func.func @transform_4(%arg0: i32) -> (i32, i32) {
    %c0_i32 = arith.constant 0 : i32
    %c0_i32_0 = arith.constant 0 : i32
    %c0_i32_1 = arith.constant 0 : i32
    return %c0_i32, %c0_i32_0 : i32, i32
  }
  func.func @transform_5(%arg0: i32) -> (i32, i32) {
    %c0_i32 = arith.constant 0 : i32
    %c0_i32_0 = arith.constant 0 : i32
    %c0_i32_1 = arith.constant 0 : i32
    return %c0_i32, %c0_i32_0 : i32, i32
  }
  func.func @transform_6(%arg0: i32) -> (i32, i32) {
    %c0_i32 = arith.constant 0 : i32
    %c0_i32_0 = arith.constant 0 : i32
    %c0_i32_1 = arith.constant 0 : i32
    return %c0_i32, %c0_i32_0 : i32, i32
  }
  func.func @transform_7(%arg0: i32) -> (i32, i32) {
    %c0_i32 = arith.constant 0 : i32
    %c0_i32_0 = arith.constant 0 : i32
    %c0_i32_1 = arith.constant 0 : i32
    return %c0_i32, %c0_i32_0 : i32, i32
  }
  func.func @transform_8(%arg0: i32) -> (i32, i32) {
    %c0_i32 = arith.constant 0 : i32
    %c0_i32_0 = arith.constant 0 : i32
    %c0_i32_1 = arith.constant 0 : i32
    return %c0_i32, %c0_i32_0 : i32, i32
  }
  func.func @transform_9(%arg0: i32) -> (i32, i32) {
    %c0_i32 = arith.constant 0 : i32
    %c0_i32_0 = arith.constant 0 : i32
    %c0_i32_1 = arith.constant 0 : i32
    return %c0_i32, %c0_i32_0 : i32, i32
  }
  func.func @transform_10(%arg0: i32) -> (i32, i32) {
    %c0_i32 = arith.constant 0 : i32
    %c0_i32_0 = arith.constant 0 : i32
    %c0_i32_1 = arith.constant 0 : i32
    return %c0_i32, %c0_i32_0 : i32, i32
  }
  func.func @transform_11(%arg0: i32) -> (i32, i32) {
    %c0_i32 = arith.constant 0 : i32
    %c0_i32_0 = arith.constant 0 : i32
    return %arg0, %c0_i32 : i32, i32
  }
}

</mosaic_0001>

<llo_original>
// kernel: critic_forward.1
$region0: #{critic_forward.1}
  #allocation0 [shape = 'u32[]', space=smem, size = 0x4, offset = 0x4, fixed_abs, tag = 'smem constant byte address 0x4 - core index']
  #allocation1 [shape = 'u32[72,128]{1,0:T(1,128)}', space=vmem, size = 0x9000, scoped, tag = 'internal scratch']
  #allocation2 [shape = 'f32[1,1]{1,0:T(1,128)S(1)}', space=vmem, size = 0x200, scoped, tag = 'scoped memory for critic_forward.1']
  %s0 = inlined_call_operand.vmem [shape: f32[128,33], index: 0, kind: input, shape index: {}]
  %s1 = inlined_call_operand.vmem [shape: f32[128,4], index: 1, kind: input, shape index: {}]
  %s2 = inlined_call_operand.vmem [shape: bf16[33,256], index: 2, kind: input, shape index: {}]
  %s3 = inlined_call_operand.vmem [shape: f32[1,256], index: 3, kind: input, shape index: {}]
  %s4 = inlined_call_operand.vmem [shape: bf16[256,128], index: 4, kind: input, shape index: {}]
  %s5 = inlined_call_operand.vmem [shape: f32[4,128], index: 5, kind: input, shape index: {}]
  %s6 = inlined_call_operand.vmem [shape: f32[1,128], index: 6, kind: input, shape index: {}]
  %s7 = inlined_call_operand.vmem [shape: bf16[128,128], index: 7, kind: input, shape index: {}]
  %s8 = inlined_call_operand.vmem [shape: f32[1,128], index: 8, kind: input, shape index: {}]
  %s9 = inlined_call_operand.vmem [shape: f32[1,128], index: 9, kind: input, shape index: {}]
  %s10 = inlined_call_operand.<no memory space> [shape: f32[1,1], index: 10, kind: input, shape index: {}]
  %s11 = inlined_call_operand.vmem [shape: f32[1,128], index: 11, kind: output, shape index: {}]
  %s12 = sld [smem:[#allocation0]]
  $region54: #{critic_forward.1} parent=0
    _
  %s14 = ssub.s32 1, %s12
  %s15 = scalar_select 0, %s14, %s12
  %v16 = vstv %s10
  %17 = vst [vmem:[#allocation2] sm:$0x1] %v16
  // Predicated region
  $region2: #{critic_forward.1} parent=0 // pred_check
    _
  $region3: #{critic_forward.1} parent=0 // pred_check_branch
    %19 = sbr.rel (0) target = $region5
  $region4: #{critic_forward.1} parent=0 // pred_region
    _
  $region5: #{critic_forward.1} parent=0 // pred_fallthru
    _
  // Predicated region
  $region6: #{critic_forward.1} parent=0 // pred_check
    _
  $region7: #{critic_forward.1} parent=0 // pred_check_branch
    %21 = sbr.rel (0) target = $region9
  $region8: #{critic_forward.1} parent=0 // pred_region
    _
  $region9: #{critic_forward.1} parent=0 // pred_fallthru
    _
  // Predicated region
  $region10: #{critic_forward.1} parent=0 // pred_check
    _
  $region11: #{critic_forward.1} parent=0 // pred_check_branch
    %23 = sbr.rel (0) target = $region13
  $region12: #{critic_forward.1} parent=0 // pred_region
    _
  $region13: #{critic_forward.1} parent=0 // pred_fallthru
    _
  // Predicated region
  $region14: #{critic_forward.1} parent=0 // pred_check
    _
  $region15: #{critic_forward.1} parent=0 // pred_check_branch
    %25 = sbr.rel (0) target = $region17
  $region16: #{critic_forward.1} parent=0 // pred_region
    _
  $region17: #{critic_forward.1} parent=0 // pred_fallthru
    _
  // Predicated region
  $region18: #{critic_forward.1} parent=0 // pred_check
    _
  $region19: #{critic_forward.1} parent=0 // pred_check_branch
    %27 = sbr.rel (0) target = $region21
  $region20: #{critic_forward.1} parent=0 // pred_region
    _
  $region21: #{critic_forward.1} parent=0 // pred_fallthru
    _
  // Predicated region
  $region22: #{critic_forward.1} parent=0 // pred_check
    _
  $region23: #{critic_forward.1} parent=0 // pred_check_branch
    %29 = sbr.rel (0) target = $region25
  $region24: #{critic_forward.1} parent=0 // pred_region
    _
  $region25: #{critic_forward.1} parent=0 // pred_fallthru
    _
  // Predicated region
  $region26: #{critic_forward.1} parent=0 // pred_check
    _
  $region27: #{critic_forward.1} parent=0 // pred_check_branch
    %31 = sbr.rel (0) target = $region29
  $region28: #{critic_forward.1} parent=0 // pred_region
    _
  $region29: #{critic_forward.1} parent=0 // pred_fallthru
    _
  // Predicated region
  $region30: #{critic_forward.1} parent=0 // pred_check
    _
  $region31: #{critic_forward.1} parent=0 // pred_check_branch
    %33 = sbr.rel (0) target = $region33
  $region32: #{critic_forward.1} parent=0 // pred_region
    _
  $region33: #{critic_forward.1} parent=0 // pred_fallthru
    _
  // Predicated region
  $region34: #{critic_forward.1} parent=0 // pred_check
    _
  $region35: #{critic_forward.1} parent=0 // pred_check_branch
    %35 = sbr.rel (0) target = $region37
  $region36: #{critic_forward.1} parent=0 // pred_region
    _
  $region37: #{critic_forward.1} parent=0 // pred_fallthru
    _
  // Predicated region
  $region38: #{critic_forward.1} parent=0 // pred_check
    _
  $region39: #{critic_forward.1} parent=0 // pred_check_branch
    %37 = sbr.rel (0) target = $region41
  $region40: #{critic_forward.1} parent=0 // pred_region
    _
  $region41: #{critic_forward.1} parent=0 // pred_fallthru
    _
  // Predicated region
  $region42: #{critic_forward.1} parent=0 // pred_check
    _
  $region43: #{critic_forward.1} parent=0 // pred_check_branch
    %39 = sbr.rel (0) target = $region45
  $region44: #{critic_forward.1} parent=0 // pred_region
    _
  $region45: #{critic_forward.1} parent=0 // pred_fallthru
    _
  %v41 = vld [vmem:[%s0] sm:$0xff]
  %v42 = vld [vmem:[%s0 + $0x8] sm:$0xff]
  %v43 = vld [vmem:[%s0 + $0x10] sm:$0xff]
  %v44 = vld [vmem:[%s0 + $0x18] sm:$0xff]
  %v45 = vld [vmem:[%s0 + $0x20] sm:$0xff]
  %v46 = vld [vmem:[%s0 + $0x28] sm:$0xff]
  %v47 = vld [vmem:[%s0 + $0x30] sm:$0xff]
  %v48 = vld [vmem:[%s0 + $0x38] sm:$0xff]
  %v49 = vld [vmem:[%s0 + $0x40] sm:$0xff]
  %v50 = vld [vmem:[%s0 + $0x48] sm:$0xff]
  %v51 = vld [vmem:[%s0 + $0x50] sm:$0xff]
  %v52 = vld [vmem:[%s0 + $0x58] sm:$0xff]
  %v53 = vld [vmem:[%s0 + $0x60] sm:$0xff]
  %v54 = vld [vmem:[%s0 + $0x68] sm:$0xff]
  %v55 = vld [vmem:[%s0 + $0x70] sm:$0xff]
  %v56 = vld [vmem:[%s0 + $0x78] sm:$0xff]
  %v57 = vpack.c.bf16 %v42, %v41
  %v58 = vpack.c.bf16 %v44, %v43
  %v59 = vpack.c.bf16 %v46, %v45
  %v60 = vpack.c.bf16 %v48, %v47
  %v61 = vpack.c.bf16 %v50, %v49
  %v62 = vpack.c.bf16 %v52, %v51
  %v63 = vpack.c.bf16 %v54, %v53
  %v64 = vpack.c.bf16 %v56, %v55
  %v65 = vld [vmem:[%s2] sm:$0xff]
  %v66 = vld [vmem:[%s2 + $0x8] sm:$0xff]
  %v67 = vld [vmem:[%s2 + $0x10] sm:$0xff]
  %v68 = vld [vmem:[%s2 + $0x18] sm:$0xff]
  %v69 = vld [vmem:[%s2 + $0x20] sm:$0x11]
  %v70 = vld [vmem:[%s3] sm:$0x3]
  %v72 = vperm.slane %v70, 0
  %v73 = vperm.slane %v70, 1
  %v81 = vunpack.c.l.b16 %v65
  %v82 = vunpack.c.h.b16 %v65
  %v83 = vunpack.c.l.b16 %v66
  %v84 = vunpack.c.h.b16 %v66
  %v85 = vunpack.c.l.b16 %v67
  %v86 = vunpack.c.h.b16 %v67
  %v87 = vunpack.c.l.b16 %v68
  %v88 = vunpack.c.h.b16 %v68
  %v89 = vunpack.c.l.b16 %v69
  %v90 = vunpack.c.h.b16 %v69
  %v91 = vpack.c.b16 %v83, %v81
  %v92 = vpack.c.b16 %v84, %v82
  %v93 = vpack.c.b16 %v87, %v85
  %v94 = vpack.c.b16 %v88, %v86
  %v95 = vpack.c.b16 %v89, %v89
  %v96 = vpack.c.b16 %v90, %v90
  %vm101 = vcmask 269312
  %v103 = vsel %vm101, %v57, 0
  %v106 = vsel %vm101, %v58, 0
  %v109 = vsel %vm101, %v59, 0
  %v112 = vsel %vm101, %v60, 0
  %v115 = vsel %vm101, %v61, 0
  %v118 = vsel %vm101, %v62, 0
  %v121 = vsel %vm101, %v63, 0
  %v124 = vsel %vm101, %v64, 0
  %vm126 = vcmask 1040384
  %v127 = vsel 0, 4294967295, 65535
  %v128 = vsel %vm126, %v127, 0
  %v130 = vand.u32 %v95, %v128
  %v133 = vand.u32 %v96, %v128
  %135 = vmatpush.bf16.msra.mxu0 0
  %136 = vmatpush.bf16.msra.mxu0 0
  %137 = vmatpush.bf16.msra.mxu0 0
  %138 = vmatpush.bf16.msra.mxu0 0
  %139 = vmatpush.bf16.msra.mxu0 0
  %140 = vmatpush.bf16.msra.mxu0 %v130
  %141 = vmatpush.bf16.msra.mxu0 %v93
  %142 = vmatpush.bf16.msra.mxu0 %v91
  %143 = vmatmul.bf16.gmra.mxu0 %v103
  %v144 = vpop.f32.mrf.mxu0
  %v145 = vadd.f32 %v72, %v144
  %v146 = vpop.f32.mrf.mxu0
  %v147 = vadd.f32 %v72, %v146
  %148 = vmatmul.bf16.gmra.mxu0 %v106
  %v149 = vpop.f32.mrf.mxu0
  %v150 = vadd.f32 %v72, %v149
  %v151 = vpop.f32.mrf.mxu0
  %v152 = vadd.f32 %v72, %v151
  %153 = vmatmul.bf16.gmra.mxu0 %v109
  %v154 = vpop.f32.mrf.mxu0
  %v155 = vadd.f32 %v72, %v154
  %v156 = vpop.f32.mrf.mxu0
  %v157 = vadd.f32 %v72, %v156
  %158 = vmatmul.bf16.gmra.mxu0 %v112
  %v159 = vpop.f32.mrf.mxu0
  %v160 = vadd.f32 %v72, %v159
  %v161 = vpop.f32.mrf.mxu0
  %v162 = vadd.f32 %v72, %v161
  %163 = vmatmul.bf16.gmra.mxu0 %v115
  %v164 = vpop.f32.mrf.mxu0
  %v165 = vadd.f32 %v72, %v164
  %v166 = vpop.f32.mrf.mxu0
  %v167 = vadd.f32 %v72, %v166
  %168 = vmatmul.bf16.gmra.mxu0 %v118
  %v169 = vpop.f32.mrf.mxu0
  %v170 = vadd.f32 %v72, %v169
  %v171 = vpop.f32.mrf.mxu0
  %v172 = vadd.f32 %v72, %v171
  %173 = vmatmul.bf16.gmra.mxu0 %v121
  %v174 = vpop.f32.mrf.mxu0
  %v175 = vadd.f32 %v72, %v174
  %v176 = vpop.f32.mrf.mxu0
  %v177 = vadd.f32 %v72, %v176
  %178 = vmatmul.bf16.gmra.mxu0 %v124
  %v179 = vpop.f32.mrf.mxu0
  %v180 = vadd.f32 %v72, %v179
  %v181 = vpop.f32.mrf.mxu0
  %v182 = vadd.f32 %v72, %v181
  %183 = vdwg.mxu0
  %184 = vmatpush.bf16.msra.mxu0 0
  %185 = vmatpush.bf16.msra.mxu0 0
  %186 = vmatpush.bf16.msra.mxu0 0
  %187 = vmatpush.bf16.msra.mxu0 0
  %188 = vmatpush.bf16.msra.mxu0 0
  %189 = vmatpush.bf16.msra.mxu0 %v133
  %190 = vmatpush.bf16.msra.mxu0 %v94
  %191 = vmatpush.bf16.msra.mxu0 %v92
  %192 = vmatmul.bf16.gmra.mxu0 %v103
  %v193 = vpop.f32.mrf.mxu0
  %v194 = vadd.f32 %v73, %v193
  %v195 = vpop.f32.mrf.mxu0
  %v196 = vadd.f32 %v73, %v195
  %197 = vmatmul.bf16.gmra.mxu0 %v106
  %v198 = vpop.f32.mrf.mxu0
  %v199 = vadd.f32 %v73, %v198
  %v200 = vpop.f32.mrf.mxu0
  %v201 = vadd.f32 %v73, %v200
  %202 = vmatmul.bf16.gmra.mxu0 %v109
  %v203 = vpop.f32.mrf.mxu0
  %v204 = vadd.f32 %v73, %v203
  %v205 = vpop.f32.mrf.mxu0
  %v206 = vadd.f32 %v73, %v205
  %207 = vmatmul.bf16.gmra.mxu0 %v112
  %v208 = vpop.f32.mrf.mxu0
  %v209 = vadd.f32 %v73, %v208
  %v210 = vpop.f32.mrf.mxu0
  %v211 = vadd.f32 %v73, %v210
  %212 = vmatmul.bf16.gmra.mxu0 %v115
  %v213 = vpop.f32.mrf.mxu0
  %v214 = vadd.f32 %v73, %v213
  %v215 = vpop.f32.mrf.mxu0
  %v216 = vadd.f32 %v73, %v215
  %217 = vmatmul.bf16.gmra.mxu0 %v118
  %v218 = vpop.f32.mrf.mxu0
  %v219 = vadd.f32 %v73, %v218
  %v220 = vpop.f32.mrf.mxu0
  %v221 = vadd.f32 %v73, %v220
  %222 = vmatmul.bf16.gmra.mxu0 %v121
  %v223 = vpop.f32.mrf.mxu0
  %v224 = vadd.f32 %v73, %v223
  %v225 = vpop.f32.mrf.mxu0
  %v226 = vadd.f32 %v73, %v225
  %227 = vmatmul.bf16.gmra.mxu0 %v124
  %v228 = vpop.f32.mrf.mxu0
  %v229 = vadd.f32 %v73, %v228
  %v230 = vpop.f32.mrf.mxu0
  %v231 = vadd.f32 %v73, %v230
  %232 = vdwg.mxu0
  %vm233 = vcmp.ge.f32.partialorder %v145, 0.0
  %vm234 = vcmp.ge.f32.partialorder %v194, 0.0
  %vm235 = vcmp.ge.f32.partialorder %v147, 0.0
  %vm236 = vcmp.ge.f32.partialorder %v196, 0.0
  %vm237 = vcmp.ge.f32.partialorder %v150, 0.0
  %vm238 = vcmp.ge.f32.partialorder %v199, 0.0
  %vm239 = vcmp.ge.f32.partialorder %v152, 0.0
  %vm240 = vcmp.ge.f32.partialorder %v201, 0.0
  %vm241 = vcmp.ge.f32.partialorder %v155, 0.0
  %vm242 = vcmp.ge.f32.partialorder %v204, 0.0
  %vm243 = vcmp.ge.f32.partialorder %v157, 0.0
  %vm244 = vcmp.ge.f32.partialorder %v206, 0.0
  %vm245 = vcmp.ge.f32.partialorder %v160, 0.0
  %vm246 = vcmp.ge.f32.partialorder %v209, 0.0
  %vm247 = vcmp.ge.f32.partialorder %v162, 0.0
  %vm248 = vcmp.ge.f32.partialorder %v211, 0.0
  %vm249 = vcmp.ge.f32.partialorder %v165, 0.0
  %vm250 = vcmp.ge.f32.partialorder %v214, 0.0
  %vm251 = vcmp.ge.f32.partialorder %v167, 0.0
  %vm252 = vcmp.ge.f32.partialorder %v216, 0.0
  %vm253 = vcmp.ge.f32.partialorder %v170, 0.0
  %vm254 = vcmp.ge.f32.partialorder %v219, 0.0
  %vm255 = vcmp.ge.f32.partialorder %v172, 0.0
  %vm256 = vcmp.ge.f32.partialorder %v221, 0.0
  %vm257 = vcmp.ge.f32.partialorder %v175, 0.0
  %vm258 = vcmp.ge.f32.partialorder %v224, 0.0
  %vm259 = vcmp.ge.f32.partialorder %v177, 0.0
  %vm260 = vcmp.ge.f32.partialorder %v226, 0.0
  %vm261 = vcmp.ge.f32.partialorder %v180, 0.0
  %vm262 = vcmp.ge.f32.partialorder %v229, 0.0
  %vm263 = vcmp.ge.f32.partialorder %v182, 0.0
  %vm264 = vcmp.ge.f32.partialorder %v231, 0.0
  %v265 = vmul.f32 %v145, 0.01
  %v266 = vmul.f32 %v194, 0.01
  %v267 = vmul.f32 %v147, 0.01
  %v268 = vmul.f32 %v196, 0.01
  %v269 = vmul.f32 %v150, 0.01
  %v270 = vmul.f32 %v199, 0.01
  %v271 = vmul.f32 %v152, 0.01
  %v272 = vmul.f32 %v201, 0.01
  %v273 = vmul.f32 %v155, 0.01
  %v274 = vmul.f32 %v204, 0.01
  %v275 = vmul.f32 %v157, 0.01
  %v276 = vmul.f32 %v206, 0.01
  %v277 = vmul.f32 %v160, 0.01
  %v278 = vmul.f32 %v209, 0.01
  %v279 = vmul.f32 %v162, 0.01
  %v280 = vmul.f32 %v211, 0.01
  %v281 = vmul.f32 %v165, 0.01
  %v282 = vmul.f32 %v214, 0.01
  %v283 = vmul.f32 %v167, 0.01
  %v284 = vmul.f32 %v216, 0.01
  %v285 = vmul.f32 %v170, 0.01
  %v286 = vmul.f32 %v219, 0.01
  %v287 = vmul.f32 %v172, 0.01
  %v288 = vmul.f32 %v221, 0.01
  %v289 = vmul.f32 %v175, 0.01
  %v290 = vmul.f32 %v224, 0.01
  %v291 = vmul.f32 %v177, 0.01
  %v292 = vmul.f32 %v226, 0.01
  %v293 = vmul.f32 %v180, 0.01
  %v294 = vmul.f32 %v229, 0.01
  %v295 = vmul.f32 %v182, 0.01
  %v296 = vmul.f32 %v231, 0.01
  %v297 = vsel %vm233, %v145, %v265
  %v298 = vsel %vm234, %v194, %v266
  %v299 = vsel %vm235, %v147, %v267
  %v300 = vsel %vm236, %v196, %v268
  %v301 = vsel %vm237, %v150, %v269
  %v302 = vsel %vm238, %v199, %v270
  %v303 = vsel %vm239, %v152, %v271
  %v304 = vsel %vm240, %v201, %v272
  %v305 = vsel %vm241, %v155, %v273
  %v306 = vsel %vm242, %v204, %v274
  %v307 = vsel %vm243, %v157, %v275
  %v308 = vsel %vm244, %v206, %v276
  %v309 = vsel %vm245, %v160, %v277
  %v310 = vsel %vm246, %v209, %v278
  %v311 = vsel %vm247, %v162, %v279
  %v312 = vsel %vm248, %v211, %v280
  %v313 = vsel %vm249, %v165, %v281
  %v314 = vsel %vm250, %v214, %v282
  %v315 = vsel %vm251, %v167, %v283
  %v316 = vsel %vm252, %v216, %v284
  %v317 = vsel %vm253, %v170, %v285
  %v318 = vsel %vm254, %v219, %v286
  %v319 = vsel %vm255, %v172, %v287
  %v320 = vsel %vm256, %v221, %v288
  %v321 = vsel %vm257, %v175, %v289
  %v322 = vsel %vm258, %v224, %v290
  %v323 = vsel %vm259, %v177, %v291
  %v324 = vsel %vm260, %v226, %v292
  %v325 = vsel %vm261, %v180, %v293
  %v326 = vsel %vm262, %v229, %v294
  %v327 = vsel %vm263, %v182, %v295
  %v328 = vsel %vm264, %v231, %v296
  %v329 = vpack.c.bf16 %v299, %v297
  %v330 = vpack.c.bf16 %v300, %v298
  %v331 = vpack.c.bf16 %v303, %v301
  %v332 = vpack.c.bf16 %v304, %v302
  %v333 = vpack.c.bf16 %v307, %v305
  %v334 = vpack.c.bf16 %v308, %v306
  %v335 = vpack.c.bf16 %v311, %v309
  %v336 = vpack.c.bf16 %v312, %v310
  %v337 = vpack.c.bf16 %v315, %v313
  %v338 = vpack.c.bf16 %v316, %v314
  %v339 = vpack.c.bf16 %v319, %v317
  %v340 = vpack.c.bf16 %v320, %v318
  %v341 = vpack.c.bf16 %v323, %v321
  %v342 = vpack.c.bf16 %v324, %v322
  %v343 = vpack.c.bf16 %v327, %v325
  %v344 = vpack.c.bf16 %v328, %v326
  %v345 = vld [vmem:[%s4] sm:$0xf]
  %v346 = vld [vmem:[%s4 + $0x4] sm:$0xf]
  %v347 = vld [vmem:[%s4 + $0x8] sm:$0xf]
  %v348 = vld [vmem:[%s4 + $0xc] sm:$0xf]
  %v349 = vld [vmem:[%s4 + $0x10] sm:$0xf]
  %v350 = vld [vmem:[%s4 + $0x14] sm:$0xf]
  %v351 = vld [vmem:[%s4 + $0x18] sm:$0xf]
  %v352 = vld [vmem:[%s4 + $0x1c] sm:$0xf]
  %v353 = vld [vmem:[%s4 + $0x20] sm:$0xf]
  %v354 = vld [vmem:[%s4 + $0x24] sm:$0xf]
  %v355 = vld [vmem:[%s4 + $0x28] sm:$0xf]
  %v356 = vld [vmem:[%s4 + $0x2c] sm:$0xf]
  %v357 = vld [vmem:[%s4 + $0x30] sm:$0xf]
  %v358 = vld [vmem:[%s4 + $0x34] sm:$0xf]
  %v359 = vld [vmem:[%s4 + $0x38] sm:$0xf]
  %v360 = vld [vmem:[%s4 + $0x3c] sm:$0xf]
  %v361 = vld [vmem:[%s4 + $0x40] sm:$0xf]
  %v362 = vld [vmem:[%s4 + $0x44] sm:$0xf]
  %v363 = vld [vmem:[%s4 + $0x48] sm:$0xf]
  %v364 = vld [vmem:[%s4 + $0x4c] sm:$0xf]
  %v365 = vld [vmem:[%s4 + $0x50] sm:$0xf]
  %v366 = vld [vmem:[%s4 + $0x54] sm:$0xf]
  %v367 = vld [vmem:[%s4 + $0x58] sm:$0xf]
  %v368 = vld [vmem:[%s4 + $0x5c] sm:$0xf]
  %v369 = vld [vmem:[%s4 + $0x60] sm:$0xf]
  %v370 = vld [vmem:[%s4 + $0x64] sm:$0xf]
  %v371 = vld [vmem:[%s4 + $0x68] sm:$0xf]
  %v372 = vld [vmem:[%s4 + $0x6c] sm:$0xf]
  %v373 = vld [vmem:[%s4 + $0x70] sm:$0xf]
  %v374 = vld [vmem:[%s4 + $0x74] sm:$0xf]
  %v375 = vld [vmem:[%s4 + $0x78] sm:$0xf]
  %v376 = vld [vmem:[%s4 + $0x7c] sm:$0xf]
  %v377 = vld [vmem:[%s6] sm:$0x1]
  %v379 = vperm.slane %v377, 0
  %v413 = vunpack.c.l.b16 %v345
  %v414 = vunpack.c.l.b16 %v346
  %v415 = vunpack.c.l.b16 %v347
  %v416 = vunpack.c.l.b16 %v348
  %v417 = vunpack.c.l.b16 %v349
  %v418 = vunpack.c.l.b16 %v350
  %v419 = vunpack.c.l.b16 %v351
  %v420 = vunpack.c.l.b16 %v352
  %v421 = vunpack.c.l.b16 %v353
  %v422 = vunpack.c.l.b16 %v354
  %v423 = vunpack.c.l.b16 %v355
  %v424 = vunpack.c.l.b16 %v356
  %v425 = vunpack.c.l.b16 %v357
  %v426 = vunpack.c.l.b16 %v358
  %v427 = vunpack.c.l.b16 %v359
  %v428 = vunpack.c.l.b16 %v360
  %v429 = vunpack.c.l.b16 %v361
  %v430 = vunpack.c.l.b16 %v362
  %v431 = vunpack.c.l.b16 %v363
  %v432 = vunpack.c.l.b16 %v364
  %v433 = vunpack.c.l.b16 %v365
  %v434 = vunpack.c.l.b16 %v366
  %v435 = vunpack.c.l.b16 %v367
  %v436 = vunpack.c.l.b16 %v368
  %v437 = vunpack.c.l.b16 %v369
  %v438 = vunpack.c.l.b16 %v370
  %v439 = vunpack.c.l.b16 %v371
  %v440 = vunpack.c.l.b16 %v372
  %v441 = vunpack.c.l.b16 %v373
  %v442 = vunpack.c.l.b16 %v374
  %v443 = vunpack.c.l.b16 %v375
  %v444 = vunpack.c.l.b16 %v376
  %v445 = vpack.c.b16 %v414, %v413
  %v446 = vpack.c.b16 %v416, %v415
  %v447 = vpack.c.b16 %v418, %v417
  %v448 = vpack.c.b16 %v420, %v419
  %v449 = vpack.c.b16 %v422, %v421
  %v450 = vpack.c.b16 %v424, %v423
  %v451 = vpack.c.b16 %v426, %v425
  %v452 = vpack.c.b16 %v428, %v427
  %v453 = vpack.c.b16 %v430, %v429
  %v454 = vpack.c.b16 %v432, %v431
  %v455 = vpack.c.b16 %v434, %v433
  %v456 = vpack.c.b16 %v436, %v435
  %v457 = vpack.c.b16 %v438, %v437
  %v458 = vpack.c.b16 %v440, %v439
  %v459 = vpack.c.b16 %v442, %v441
  %v460 = vpack.c.b16 %v444, %v443
  %477 = vmatpush.bf16.msra.mxu0 %v452
  %478 = vmatpush.bf16.msra.mxu0 %v451
  %479 = vmatpush.bf16.msra.mxu0 %v450
  %480 = vmatpush.bf16.msra.mxu0 %v449
  %481 = vmatpush.bf16.msra.mxu0 %v448
  %482 = vmatpush.bf16.msra.mxu0 %v447
  %483 = vmatpush.bf16.msra.mxu0 %v446
  %484 = vmatpush.bf16.msra.mxu0 %v445
  %485 = vmatmul.bf16.gmra.mxu0 %v329
  %v486 = vpop.f32.mrf.mxu0
  %v487 = vadd.f32 %v379, %v486
  %v488 = vpop.f32.mrf.mxu0
  %v489 = vadd.f32 %v379, %v488
  %490 = vmatmul.bf16.gmra.mxu0 %v331
  %v491 = vpop.f32.mrf.mxu0
  %v492 = vadd.f32 %v379, %v491
  %v493 = vpop.f32.mrf.mxu0
  %v494 = vadd.f32 %v379, %v493
  %495 = vmatmul.bf16.gmra.mxu0 %v333
  %v496 = vpop.f32.mrf.mxu0
  %v497 = vadd.f32 %v379, %v496
  %v498 = vpop.f32.mrf.mxu0
  %v499 = vadd.f32 %v379, %v498
  %500 = vmatmul.bf16.gmra.mxu0 %v335
  %v501 = vpop.f32.mrf.mxu0
  %v502 = vadd.f32 %v379, %v501
  %v503 = vpop.f32.mrf.mxu0
  %v504 = vadd.f32 %v379, %v503
  %505 = vmatmul.bf16.gmra.mxu0 %v337
  %v506 = vpop.f32.mrf.mxu0
  %v507 = vadd.f32 %v379, %v506
  %v508 = vpop.f32.mrf.mxu0
  %v509 = vadd.f32 %v379, %v508
  %510 = vmatmul.bf16.gmra.mxu0 %v339
  %v511 = vpop.f32.mrf.mxu0
  %v512 = vadd.f32 %v379, %v511
  %v513 = vpop.f32.mrf.mxu0
  %v514 = vadd.f32 %v379, %v513
  %515 = vmatmul.bf16.gmra.mxu0 %v341
  %v516 = vpop.f32.mrf.mxu0
  %v517 = vadd.f32 %v379, %v516
  %v518 = vpop.f32.mrf.mxu0
  %v519 = vadd.f32 %v379, %v518
  %520 = vmatmul.bf16.gmra.mxu0 %v343
  %v521 = vpop.f32.mrf.mxu0
  %v522 = vadd.f32 %v379, %v521
  %v523 = vpop.f32.mrf.mxu0
  %v524 = vadd.f32 %v379, %v523
  %525 = vdwg.mxu0
  %526 = vmatpush.bf16.msra.mxu0 %v460
  %527 = vmatpush.bf16.msra.mxu0 %v459
  %528 = vmatpush.bf16.msra.mxu0 %v458
  %529 = vmatpush.bf16.msra.mxu0 %v457
  %530 = vmatpush.bf16.msra.mxu0 %v456
  %531 = vmatpush.bf16.msra.mxu0 %v455
  %532 = vmatpush.bf16.msra.mxu0 %v454
  %533 = vmatpush.bf16.msra.mxu0 %v453
  %534 = vmatmul.bf16.gmra.mxu0 %v330
  %v535 = vpop.f32.mrf.mxu0
  %v536 = vadd.f32 %v487, %v535
  %v537 = vpop.f32.mrf.mxu0
  %v538 = vadd.f32 %v489, %v537
  %539 = vmatmul.bf16.gmra.mxu0 %v332
  %v540 = vpop.f32.mrf.mxu0
  %v541 = vadd.f32 %v492, %v540
  %v542 = vpop.f32.mrf.mxu0
  %v543 = vadd.f32 %v494, %v542
  %544 = vmatmul.bf16.gmra.mxu0 %v334
  %v545 = vpop.f32.mrf.mxu0
  %v546 = vadd.f32 %v497, %v545
  %v547 = vpop.f32.mrf.mxu0
  %v548 = vadd.f32 %v499, %v547
  %549 = vmatmul.bf16.gmra.mxu0 %v336
  %v550 = vpop.f32.mrf.mxu0
  %v551 = vadd.f32 %v502, %v550
  %v552 = vpop.f32.mrf.mxu0
  %v553 = vadd.f32 %v504, %v552
  %554 = vmatmul.bf16.gmra.mxu0 %v338
  %v555 = vpop.f32.mrf.mxu0
  %v556 = vadd.f32 %v507, %v555
  %v557 = vpop.f32.mrf.mxu0
  %v558 = vadd.f32 %v509, %v557
  %559 = vmatmul.bf16.gmra.mxu0 %v340
  %v560 = vpop.f32.mrf.mxu0
  %v561 = vadd.f32 %v512, %v560
  %v562 = vpop.f32.mrf.mxu0
  %v563 = vadd.f32 %v514, %v562
  %564 = vmatmul.bf16.gmra.mxu0 %v342
  %v565 = vpop.f32.mrf.mxu0
  %v566 = vadd.f32 %v517, %v565
  %v567 = vpop.f32.mrf.mxu0
  %v568 = vadd.f32 %v519, %v567
  %569 = vmatmul.bf16.gmra.mxu0 %v344
  %v570 = vpop.f32.mrf.mxu0
  %v571 = vadd.f32 %v522, %v570
  %v572 = vpop.f32.mrf.mxu0
  %v573 = vadd.f32 %v524, %v572
  %574 = vdwg.mxu0
  %v575 = vld [vmem:[%s1] sm:$0xff]
  %v576 = vld [vmem:[%s1 + $0x8] sm:$0xff]
  %v577 = vld [vmem:[%s1 + $0x10] sm:$0xff]
  %v578 = vld [vmem:[%s1 + $0x18] sm:$0xff]
  %v579 = vld [vmem:[%s1 + $0x20] sm:$0xff]
  %v580 = vld [vmem:[%s1 + $0x28] sm:$0xff]
  %v581 = vld [vmem:[%s1 + $0x30] sm:$0xff]
  %v582 = vld [vmem:[%s1 + $0x38] sm:$0xff]
  %v583 = vld [vmem:[%s1 + $0x40] sm:$0xff]
  %v584 = vld [vmem:[%s1 + $0x48] sm:$0xff]
  %v585 = vld [vmem:[%s1 + $0x50] sm:$0xff]
  %v586 = vld [vmem:[%s1 + $0x58] sm:$0xff]
  %v587 = vld [vmem:[%s1 + $0x60] sm:$0xff]
  %v588 = vld [vmem:[%s1 + $0x68] sm:$0xff]
  %v589 = vld [vmem:[%s1 + $0x70] sm:$0xff]
  %v590 = vld [vmem:[%s1 + $0x78] sm:$0xff]
  %v591 = vld [vmem:[%s5] sm:$0x1]
  %593 = vset.pattern.permute.xlu0 0
  %594 = vperm.xlu0 %593, %v575
  %v595 = vpop.permute.xlu0 %594
  %598 = vset.pattern.permute.xlu0 0
  %599 = vperm.xlu0 %598, %v576
  %v600 = vpop.permute.xlu0 %599
  %603 = vset.pattern.permute.xlu0 0
  %604 = vperm.xlu0 %603, %v577
  %v605 = vpop.permute.xlu0 %604
  %608 = vset.pattern.permute.xlu0 0
  %609 = vperm.xlu0 %608, %v578
  %v610 = vpop.permute.xlu0 %609
  %613 = vset.pattern.permute.xlu0 0
  %614 = vperm.xlu0 %613, %v579
  %v615 = vpop.permute.xlu0 %614
  %618 = vset.pattern.permute.xlu0 0
  %619 = vperm.xlu0 %618, %v580
  %v620 = vpop.permute.xlu0 %619
  %623 = vset.pattern.permute.xlu0 0
  %624 = vperm.xlu0 %623, %v581
  %v625 = vpop.permute.xlu0 %624
  %628 = vset.pattern.permute.xlu0 0
  %629 = vperm.xlu0 %628, %v582
  %v630 = vpop.permute.xlu0 %629
  %633 = vset.pattern.permute.xlu0 0
  %634 = vperm.xlu0 %633, %v583
  %v635 = vpop.permute.xlu0 %634
  %638 = vset.pattern.permute.xlu0 0
  %639 = vperm.xlu0 %638, %v584
  %v640 = vpop.permute.xlu0 %639
  %643 = vset.pattern.permute.xlu0 0
  %644 = vperm.xlu0 %643, %v585
  %v645 = vpop.permute.xlu0 %644
  %648 = vset.pattern.permute.xlu0 0
  %649 = vperm.xlu0 %648, %v586
  %v650 = vpop.permute.xlu0 %649
  %653 = vset.pattern.permute.xlu0 0
  %654 = vperm.xlu0 %653, %v587
  %v655 = vpop.permute.xlu0 %654
  %658 = vset.pattern.permute.xlu0 0
  %659 = vperm.xlu0 %658, %v588
  %v660 = vpop.permute.xlu0 %659
  %663 = vset.pattern.permute.xlu0 0
  %664 = vperm.xlu0 %663, %v589
  %v665 = vpop.permute.xlu0 %664
  %668 = vset.pattern.permute.xlu0 0
  %669 = vperm.xlu0 %668, %v590
  %v670 = vpop.permute.xlu0 %669
  %v672 = vperm.slane %v591, 0
  %v673 = vmul.f32 %v595, %v672
  %v674 = vmul.f32 %v600, %v672
  %v675 = vmul.f32 %v605, %v672
  %v676 = vmul.f32 %v610, %v672
  %v677 = vmul.f32 %v615, %v672
  %v678 = vmul.f32 %v620, %v672
  %v679 = vmul.f32 %v625, %v672
  %v680 = vmul.f32 %v630, %v672
  %v681 = vmul.f32 %v635, %v672
  %v682 = vmul.f32 %v640, %v672
  %v683 = vmul.f32 %v645, %v672
  %v684 = vmul.f32 %v650, %v672
  %v685 = vmul.f32 %v655, %v672
  %v686 = vmul.f32 %v660, %v672
  %v687 = vmul.f32 %v665, %v672
  %v688 = vmul.f32 %v670, %v672
  %v689 = vadd.f32 %v536, %v673
  %v690 = vadd.f32 %v538, %v674
  %v691 = vadd.f32 %v541, %v675
  %v692 = vadd.f32 %v543, %v676
  %v693 = vadd.f32 %v546, %v677
  %v694 = vadd.f32 %v548, %v678
  %v695 = vadd.f32 %v551, %v679
  %v696 = vadd.f32 %v553, %v680
  %v697 = vadd.f32 %v556, %v681
  %v698 = vadd.f32 %v558, %v682
  %v699 = vadd.f32 %v561, %v683
  %v700 = vadd.f32 %v563, %v684
  %v701 = vadd.f32 %v566, %v685
  %v702 = vadd.f32 %v568, %v686
  %v703 = vadd.f32 %v571, %v687
  %v704 = vadd.f32 %v573, %v688
  %v705 = vld [vmem:[%s5 + $0x1] sm:$0x1]
  %706 = vset.pattern.permute.xlu0 1
  %707 = vperm.xlu0 %706, %v575
  %v708 = vpop.permute.xlu0 %707
  %710 = vset.pattern.permute.xlu0 1
  %711 = vperm.xlu0 %710, %v576
  %v712 = vpop.permute.xlu0 %711
  %714 = vset.pattern.permute.xlu0 1
  %715 = vperm.xlu0 %714, %v577
  %v716 = vpop.permute.xlu0 %715
  %718 = vset.pattern.permute.xlu0 1
  %719 = vperm.xlu0 %718, %v578
  %v720 = vpop.permute.xlu0 %719
  %722 = vset.pattern.permute.xlu0 1
  %723 = vperm.xlu0 %722, %v579
  %v724 = vpop.permute.xlu0 %723
  %726 = vset.pattern.permute.xlu0 1
  %727 = vperm.xlu0 %726, %v580
  %v728 = vpop.permute.xlu0 %727
  %730 = vset.pattern.permute.xlu0 1
  %731 = vperm.xlu0 %730, %v581
  %v732 = vpop.permute.xlu0 %731
  %734 = vset.pattern.permute.xlu0 1
  %735 = vperm.xlu0 %734, %v582
  %v736 = vpop.permute.xlu0 %735
  %738 = vset.pattern.permute.xlu0 1
  %739 = vperm.xlu0 %738, %v583
  %v740 = vpop.permute.xlu0 %739
  %742 = vset.pattern.permute.xlu0 1
  %743 = vperm.xlu0 %742, %v584
  %v744 = vpop.permute.xlu0 %743
  %746 = vset.pattern.permute.xlu0 1
  %747 = vperm.xlu0 %746, %v585
  %v748 = vpop.permute.xlu0 %747
  %750 = vset.pattern.permute.xlu0 1
  %751 = vperm.xlu0 %750, %v586
  %v752 = vpop.permute.xlu0 %751
  %754 = vset.pattern.permute.xlu0 1
  %755 = vperm.xlu0 %754, %v587
  %v756 = vpop.permute.xlu0 %755
  %758 = vset.pattern.permute.xlu0 1
  %759 = vperm.xlu0 %758, %v588
  %v760 = vpop.permute.xlu0 %759
  %762 = vset.pattern.permute.xlu0 1
  %763 = vperm.xlu0 %762, %v589
  %v764 = vpop.permute.xlu0 %763
  %766 = vset.pattern.permute.xlu0 1
  %767 = vperm.xlu0 %766, %v590
  %v768 = vpop.permute.xlu0 %767
  %v770 = vperm.slane %v705, 0
  %v771 = vmul.f32 %v708, %v770
  %v772 = vmul.f32 %v712, %v770
  %v773 = vmul.f32 %v716, %v770
  %v774 = vmul.f32 %v720, %v770
  %v775 = vmul.f32 %v724, %v770
  %v776 = vmul.f32 %v728, %v770
  %v777 = vmul.f32 %v732, %v770
  %v778 = vmul.f32 %v736, %v770
  %v779 = vmul.f32 %v740, %v770
  %v780 = vmul.f32 %v744, %v770
  %v781 = vmul.f32 %v748, %v770
  %v782 = vmul.f32 %v752, %v770
  %v783 = vmul.f32 %v756, %v770
  %v784 = vmul.f32 %v760, %v770
  %v785 = vmul.f32 %v764, %v770
  %v786 = vmul.f32 %v768, %v770
  %v787 = vadd.f32 %v689, %v771
  %v788 = vadd.f32 %v690, %v772
  %v789 = vadd.f32 %v691, %v773
  %v790 = vadd.f32 %v692, %v774
  %v791 = vadd.f32 %v693, %v775
  %v792 = vadd.f32 %v694, %v776
  %v793 = vadd.f32 %v695, %v777
  %v794 = vadd.f32 %v696, %v778
  %v795 = vadd.f32 %v697, %v779
  %v796 = vadd.f32 %v698, %v780
  %v797 = vadd.f32 %v699, %v781
  %v798 = vadd.f32 %v700, %v782
  %v799 = vadd.f32 %v701, %v783
  %v800 = vadd.f32 %v702, %v784
  %v801 = vadd.f32 %v703, %v785
  %v802 = vadd.f32 %v704, %v786
  %v803 = vld [vmem:[%s5 + $0x2] sm:$0x1]
  %804 = vset.pattern.permute.xlu0 2
  %805 = vperm.xlu0 %804, %v575
  %v806 = vpop.permute.xlu0 %805
  %808 = vset.pattern.permute.xlu0 2
  %809 = vperm.xlu0 %808, %v576
  %v810 = vpop.permute.xlu0 %809
  %812 = vset.pattern.permute.xlu0 2
  %813 = vperm.xlu0 %812, %v577
  %v814 = vpop.permute.xlu0 %813
  %816 = vset.pattern.permute.xlu0 2
  %817 = vperm.xlu0 %816, %v578
  %v818 = vpop.permute.xlu0 %817
  %820 = vset.pattern.permute.xlu0 2
  %821 = vperm.xlu0 %820, %v579
  %v822 = vpop.permute.xlu0 %821
  %824 = vset.pattern.permute.xlu0 2
  %825 = vperm.xlu0 %824, %v580
  %v826 = vpop.permute.xlu0 %825
  %828 = vset.pattern.permute.xlu0 2
  %829 = vperm.xlu0 %828, %v581
  %v830 = vpop.permute.xlu0 %829
  %832 = vset.pattern.permute.xlu0 2
  %833 = vperm.xlu0 %832, %v582
  %v834 = vpop.permute.xlu0 %833
  %836 = vset.pattern.permute.xlu0 2
  %837 = vperm.xlu0 %836, %v583
  %v838 = vpop.permute.xlu0 %837
  %840 = vset.pattern.permute.xlu0 2
  %841 = vperm.xlu0 %840, %v584
  %v842 = vpop.permute.xlu0 %841
  %844 = vset.pattern.permute.xlu0 2
  %845 = vperm.xlu0 %844, %v585
  %v846 = vpop.permute.xlu0 %845
  %848 = vset.pattern.permute.xlu0 2
  %849 = vperm.xlu0 %848, %v586
  %v850 = vpop.permute.xlu0 %849
  %852 = vset.pattern.permute.xlu0 2
  %853 = vperm.xlu0 %852, %v587
  %v854 = vpop.permute.xlu0 %853
  %856 = vset.pattern.permute.xlu0 2
  %857 = vperm.xlu0 %856, %v588
  %v858 = vpop.permute.xlu0 %857
  %860 = vset.pattern.permute.xlu0 2
  %861 = vperm.xlu0 %860, %v589
  %v862 = vpop.permute.xlu0 %861
  %864 = vset.pattern.permute.xlu0 2
  %865 = vperm.xlu0 %864, %v590
  %v866 = vpop.permute.xlu0 %865
  %v868 = vperm.slane %v803, 0
  %v869 = vmul.f32 %v806, %v868
  %v870 = vmul.f32 %v810, %v868
  %v871 = vmul.f32 %v814, %v868
  %v872 = vmul.f32 %v818, %v868
  %v873 = vmul.f32 %v822, %v868
  %v874 = vmul.f32 %v826, %v868
  %v875 = vmul.f32 %v830, %v868
  %v876 = vmul.f32 %v834, %v868
  %v877 = vmul.f32 %v838, %v868
  %v878 = vmul.f32 %v842, %v868
  %v879 = vmul.f32 %v846, %v868
  %v880 = vmul.f32 %v850, %v868
  %v881 = vmul.f32 %v854, %v868
  %v882 = vmul.f32 %v858, %v868
  %v883 = vmul.f32 %v862, %v868
  %v884 = vmul.f32 %v866, %v868
  %v885 = vadd.f32 %v787, %v869
  %v886 = vadd.f32 %v788, %v870
  %v887 = vadd.f32 %v789, %v871
  %v888 = vadd.f32 %v790, %v872
  %v889 = vadd.f32 %v791, %v873
  %v890 = vadd.f32 %v792, %v874
  %v891 = vadd.f32 %v793, %v875
  %v892 = vadd.f32 %v794, %v876
  %v893 = vadd.f32 %v795, %v877
  %v894 = vadd.f32 %v796, %v878
  %v895 = vadd.f32 %v797, %v879
  %v896 = vadd.f32 %v798, %v880
  %v897 = vadd.f32 %v799, %v881
  %v898 = vadd.f32 %v800, %v882
  %v899 = vadd.f32 %v801, %v883
  %v900 = vadd.f32 %v802, %v884
  %v901 = vld [vmem:[%s5 + $0x3] sm:$0x1]
  %902 = vset.pattern.permute.xlu0 3
  %903 = vperm.xlu0 %902, %v575
  %v904 = vpop.permute.xlu0 %903
  %906 = vset.pattern.permute.xlu0 3
  %907 = vperm.xlu0 %906, %v576
  %v908 = vpop.permute.xlu0 %907
  %910 = vset.pattern.permute.xlu0 3
  %911 = vperm.xlu0 %910, %v577
  %v912 = vpop.permute.xlu0 %911
  %914 = vset.pattern.permute.xlu0 3
  %915 = vperm.xlu0 %914, %v578
  %v916 = vpop.permute.xlu0 %915
  %918 = vset.pattern.permute.xlu0 3
  %919 = vperm.xlu0 %918, %v579
  %v920 = vpop.permute.xlu0 %919
  %922 = vset.pattern.permute.xlu0 3
  %923 = vperm.xlu0 %922, %v580
  %v924 = vpop.permute.xlu0 %923
  %926 = vset.pattern.permute.xlu0 3
  %927 = vperm.xlu0 %926, %v581
  %v928 = vpop.permute.xlu0 %927
  %930 = vset.pattern.permute.xlu0 3
  %931 = vperm.xlu0 %930, %v582
  %v932 = vpop.permute.xlu0 %931
  %934 = vset.pattern.permute.xlu0 3
  %935 = vperm.xlu0 %934, %v583
  %v936 = vpop.permute.xlu0 %935
  %938 = vset.pattern.permute.xlu0 3
  %939 = vperm.xlu0 %938, %v584
  %v940 = vpop.permute.xlu0 %939
  %942 = vset.pattern.permute.xlu0 3
  %943 = vperm.xlu0 %942, %v585
  %v944 = vpop.permute.xlu0 %943
  %946 = vset.pattern.permute.xlu0 3
  %947 = vperm.xlu0 %946, %v586
  %v948 = vpop.permute.xlu0 %947
  %950 = vset.pattern.permute.xlu0 3
  %951 = vperm.xlu0 %950, %v587
  %v952 = vpop.permute.xlu0 %951
  %954 = vset.pattern.permute.xlu0 3
  %955 = vperm.xlu0 %954, %v588
  %v956 = vpop.permute.xlu0 %955
  %958 = vset.pattern.permute.xlu0 3
  %959 = vperm.xlu0 %958, %v589
  %v960 = vpop.permute.xlu0 %959
  %962 = vset.pattern.permute.xlu0 3
  %963 = vperm.xlu0 %962, %v590
  %v964 = vpop.permute.xlu0 %963
  %v966 = vperm.slane %v901, 0
  %v967 = vmul.f32 %v904, %v966
  %v968 = vmul.f32 %v908, %v966
  %v969 = vmul.f32 %v912, %v966
  %v970 = vmul.f32 %v916, %v966
  %v971 = vmul.f32 %v920, %v966
  %v972 = vmul.f32 %v924, %v966
  %v973 = vmul.f32 %v928, %v966
  %v974 = vmul.f32 %v932, %v966
  %v975 = vmul.f32 %v936, %v966
  %v976 = vmul.f32 %v940, %v966
  %v977 = vmul.f32 %v944, %v966
  %v978 = vmul.f32 %v948, %v966
  %v979 = vmul.f32 %v952, %v966
  %v980 = vmul.f32 %v956, %v966
  %v981 = vmul.f32 %v960, %v966
  %v982 = vmul.f32 %v964, %v966
  %v983 = vadd.f32 %v885, %v967
  %v984 = vadd.f32 %v886, %v968
  %v985 = vadd.f32 %v887, %v969
  %v986 = vadd.f32 %v888, %v970
  %v987 = vadd.f32 %v889, %v971
  %v988 = vadd.f32 %v890, %v972
  %v989 = vadd.f32 %v891, %v973
  %v990 = vadd.f32 %v892, %v974
  %v991 = vadd.f32 %v893, %v975
  %v992 = vadd.f32 %v894, %v976
  %v993 = vadd.f32 %v895, %v977
  %v994 = vadd.f32 %v896, %v978
  %v995 = vadd.f32 %v897, %v979
  %v996 = vadd.f32 %v898, %v980
  %v997 = vadd.f32 %v899, %v981
  %v998 = vadd.f32 %v900, %v982
  %vm999 = vcmp.ge.f32.partialorder %v983, 0.0
  %vm1000 = vcmp.ge.f32.partialorder %v984, 0.0
  %vm1001 = vcmp.ge.f32.partialorder %v985, 0.0
  %vm1002 = vcmp.ge.f32.partialorder %v986, 0.0
  %vm1003 = vcmp.ge.f32.partialorder %v987, 0.0
  %vm1004 = vcmp.ge.f32.partialorder %v988, 0.0
  %vm1005 = vcmp.ge.f32.partialorder %v989, 0.0
  %vm1006 = vcmp.ge.f32.partialorder %v990, 0.0
  %vm1007 = vcmp.ge.f32.partialorder %v991, 0.0
  %vm1008 = vcmp.ge.f32.partialorder %v992, 0.0
  %vm1009 = vcmp.ge.f32.partialorder %v993, 0.0
  %vm1010 = vcmp.ge.f32.partialorder %v994, 0.0
  %vm1011 = vcmp.ge.f32.partialorder %v995, 0.0
  %vm1012 = vcmp.ge.f32.partialorder %v996, 0.0
  %vm1013 = vcmp.ge.f32.partialorder %v997, 0.0
  %vm1014 = vcmp.ge.f32.partialorder %v998, 0.0
  %v1015 = vmul.f32 %v983, 0.01
  %v1016 = vmul.f32 %v984, 0.01
  %v1017 = vmul.f32 %v985, 0.01
  %v1018 = vmul.f32 %v986, 0.01
  %v1019 = vmul.f32 %v987, 0.01
  %v1020 = vmul.f32 %v988, 0.01
  %v1021 = vmul.f32 %v989, 0.01
  %v1022 = vmul.f32 %v990, 0.01
  %v1023 = vmul.f32 %v991, 0.01
  %v1024 = vmul.f32 %v992, 0.01
  %v1025 = vmul.f32 %v993, 0.01
  %v1026 = vmul.f32 %v994, 0.01
  %v1027 = vmul.f32 %v995, 0.01
  %v1028 = vmul.f32 %v996, 0.01
  %v1029 = vmul.f32 %v997, 0.01
  %v1030 = vmul.f32 %v998, 0.01
  %v1031 = vsel %vm999, %v983, %v1015
  %v1032 = vsel %vm1000, %v984, %v1016
  %v1033 = vsel %vm1001, %v985, %v1017
  %v1034 = vsel %vm1002, %v986, %v1018
  %v1035 = vsel %vm1003, %v987, %v1019
  %v1036 = vsel %vm1004, %v988, %v1020
  %v1037 = vsel %vm1005, %v989, %v1021
  %v1038 = vsel %vm1006, %v990, %v1022
  %v1039 = vsel %vm1007, %v991, %v1023
  %v1040 = vsel %vm1008, %v992, %v1024
  %v1041 = vsel %vm1009, %v993, %v1025
  %v1042 = vsel %vm1010, %v994, %v1026
  %v1043 = vsel %vm1011, %v995, %v1027
  %v1044 = vsel %vm1012, %v996, %v1028
  %v1045 = vsel %vm1013, %v997, %v1029
  %v1046 = vsel %vm1014, %v998, %v1030
  %v1047 = vpack.c.bf16 %v1032, %v1031
  %v1048 = vpack.c.bf16 %v1034, %v1033
  %v1049 = vpack.c.bf16 %v1036, %v1035
  %v1050 = vpack.c.bf16 %v1038, %v1037
  %v1051 = vpack.c.bf16 %v1040, %v1039
  %v1052 = vpack.c.bf16 %v1042, %v1041
  %v1053 = vpack.c.bf16 %v1044, %v1043
  %v1054 = vpack.c.bf16 %v1046, %v1045
  %v1055 = vld [vmem:[%s7] sm:$0xf]
  %v1056 = vld [vmem:[%s7 + $0x4] sm:$0xf]
  %v1057 = vld [vmem:[%s7 + $0x8] sm:$0xf]
  %v1058 = vld [vmem:[%s7 + $0xc] sm:$0xf]
  %v1059 = vld [vmem:[%s7 + $0x10] sm:$0xf]
  %v1060 = vld [vmem:[%s7 + $0x14] sm:$0xf]
  %v1061 = vld [vmem:[%s7 + $0x18] sm:$0xf]
  %v1062 = vld [vmem:[%s7 + $0x1c] sm:$0xf]
  %v1063 = vld [vmem:[%s7 + $0x20] sm:$0xf]
  %v1064 = vld [vmem:[%s7 + $0x24] sm:$0xf]
  %v1065 = vld [vmem:[%s7 + $0x28] sm:$0xf]
  %v1066 = vld [vmem:[%s7 + $0x2c] sm:$0xf]
  %v1067 = vld [vmem:[%s7 + $0x30] sm:$0xf]
  %v1068 = vld [vmem:[%s7 + $0x34] sm:$0xf]
  %v1069 = vld [vmem:[%s7 + $0x38] sm:$0xf]
  %v1070 = vld [vmem:[%s7 + $0x3c] sm:$0xf]
  %v1071 = vld [vmem:[%s8] sm:$0x1]
  %v1073 = vperm.slane %v1071, 0
  %v1091 = vunpack.c.l.b16 %v1055
  %v1092 = vunpack.c.l.b16 %v1056
  %v1093 = vunpack.c.l.b16 %v1057
  %v1094 = vunpack.c.l.b16 %v1058
  %v1095 = vunpack.c.l.b16 %v1059
  %v1096 = vunpack.c.l.b16 %v1060
  %v1097 = vunpack.c.l.b16 %v1061
  %v1098 = vunpack.c.l.b16 %v1062
  %v1099 = vunpack.c.l.b16 %v1063
  %v1100 = vunpack.c.l.b16 %v1064
  %v1101 = vunpack.c.l.b16 %v1065
  %v1102 = vunpack.c.l.b16 %v1066
  %v1103 = vunpack.c.l.b16 %v1067
  %v1104 = vunpack.c.l.b16 %v1068
  %v1105 = vunpack.c.l.b16 %v1069
  %v1106 = vunpack.c.l.b16 %v1070
  %v1107 = vpack.c.b16 %v1092, %v1091
  %v1108 = vpack.c.b16 %v1094, %v1093
  %v1109 = vpack.c.b16 %v1096, %v1095
  %v1110 = vpack.c.b16 %v1098, %v1097
  %v1111 = vpack.c.b16 %v1100, %v1099
  %v1112 = vpack.c.b16 %v1102, %v1101
  %v1113 = vpack.c.b16 %v1104, %v1103
  %v1114 = vpack.c.b16 %v1106, %v1105
  %1123 = vmatpush.bf16.msra.mxu0 %v1114
  %1124 = vmatpush.bf16.msra.mxu0 %v1113
  %1125 = vmatpush.bf16.msra.mxu0 %v1112
  %1126 = vmatpush.bf16.msra.mxu0 %v1111
  %1127 = vmatpush.bf16.msra.mxu0 %v1110
  %1128 = vmatpush.bf16.msra.mxu0 %v1109
  %1129 = vmatpush.bf16.msra.mxu0 %v1108
  %1130 = vmatpush.bf16.msra.mxu0 %v1107
  %1131 = vmatmul.bf16.gmra.mxu0 %v1047
  %v1132 = vpop.f32.mrf.mxu0
  %v1133 = vadd.f32 %v1073, %v1132
  %v1134 = vpop.f32.mrf.mxu0
  %v1135 = vadd.f32 %v1073, %v1134
  %1136 = vmatmul.bf16.gmra.mxu0 %v1048
  %v1137 = vpop.f32.mrf.mxu0
  %v1138 = vadd.f32 %v1073, %v1137
  %v1139 = vpop.f32.mrf.mxu0
  %v1140 = vadd.f32 %v1073, %v1139
  %1141 = vmatmul.bf16.gmra.mxu0 %v1049
  %v1142 = vpop.f32.mrf.mxu0
  %v1143 = vadd.f32 %v1073, %v1142
  %v1144 = vpop.f32.mrf.mxu0
  %v1145 = vadd.f32 %v1073, %v1144
  %1146 = vmatmul.bf16.gmra.mxu0 %v1050
  %v1147 = vpop.f32.mrf.mxu0
  %v1148 = vadd.f32 %v1073, %v1147
  %v1149 = vpop.f32.mrf.mxu0
  %v1150 = vadd.f32 %v1073, %v1149
  %1151 = vmatmul.bf16.gmra.mxu0 %v1051
  %v1152 = vpop.f32.mrf.mxu0
  %v1153 = vadd.f32 %v1073, %v1152
  %v1154 = vpop.f32.mrf.mxu0
  %v1155 = vadd.f32 %v1073, %v1154
  %1156 = vmatmul.bf16.gmra.mxu0 %v1052
  %v1157 = vpop.f32.mrf.mxu0
  %v1158 = vadd.f32 %v1073, %v1157
  %v1159 = vpop.f32.mrf.mxu0
  %v1160 = vadd.f32 %v1073, %v1159
  %1161 = vmatmul.bf16.gmra.mxu0 %v1053
  %v1162 = vpop.f32.mrf.mxu0
  %v1163 = vadd.f32 %v1073, %v1162
  %v1164 = vpop.f32.mrf.mxu0
  %v1165 = vadd.f32 %v1073, %v1164
  %1166 = vmatmul.bf16.gmra.mxu0 %v1054
  %v1167 = vpop.f32.mrf.mxu0
  %v1168 = vadd.f32 %v1073, %v1167
  %v1169 = vpop.f32.mrf.mxu0
  %v1170 = vadd.f32 %v1073, %v1169
  %1171 = vdwg.mxu0
  %vm1172 = vcmp.ge.f32.partialorder %v1133, 0.0
  %vm1173 = vcmp.ge.f32.partialorder %v1135, 0.0
  %vm1174 = vcmp.ge.f32.partialorder %v1138, 0.0
  %vm1175 = vcmp.ge.f32.partialorder %v1140, 0.0
  %vm1176 = vcmp.ge.f32.partialorder %v1143, 0.0
  %vm1177 = vcmp.ge.f32.partialorder %v1145, 0.0
  %vm1178 = vcmp.ge.f32.partialorder %v1148, 0.0
  %vm1179 = vcmp.ge.f32.partialorder %v1150, 0.0
  %vm1180 = vcmp.ge.f32.partialorder %v1153, 0.0
  %vm1181 = vcmp.ge.f32.partialorder %v1155, 0.0
  %vm1182 = vcmp.ge.f32.partialorder %v1158, 0.0
  %vm1183 = vcmp.ge.f32.partialorder %v1160, 0.0
  %vm1184 = vcmp.ge.f32.partialorder %v1163, 0.0
  %vm1185 = vcmp.ge.f32.partialorder %v1165, 0.0
  %vm1186 = vcmp.ge.f32.partialorder %v1168, 0.0
  %vm1187 = vcmp.ge.f32.partialorder %v1170, 0.0
  %v1188 = vmul.f32 %v1133, 0.01
  %v1189 = vmul.f32 %v1135, 0.01
  %v1190 = vmul.f32 %v1138, 0.01
  %v1191 = vmul.f32 %v1140, 0.01
  %v1192 = vmul.f32 %v1143, 0.01
  %v1193 = vmul.f32 %v1145, 0.01
  %v1194 = vmul.f32 %v1148, 0.01
  %v1195 = vmul.f32 %v1150, 0.01
  %v1196 = vmul.f32 %v1153, 0.01
  %v1197 = vmul.f32 %v1155, 0.01
  %v1198 = vmul.f32 %v1158, 0.01
  %v1199 = vmul.f32 %v1160, 0.01
  %v1200 = vmul.f32 %v1163, 0.01
  %v1201 = vmul.f32 %v1165, 0.01
  %v1202 = vmul.f32 %v1168, 0.01
  %v1203 = vmul.f32 %v1170, 0.01
  %v1204 = vsel %vm1172, %v1133, %v1188
  %v1205 = vsel %vm1173, %v1135, %v1189
  %v1206 = vsel %vm1174, %v1138, %v1190
  %v1207 = vsel %vm1175, %v1140, %v1191
  %v1208 = vsel %vm1176, %v1143, %v1192
  %v1209 = vsel %vm1177, %v1145, %v1193
  %v1210 = vsel %vm1178, %v1148, %v1194
  %v1211 = vsel %vm1179, %v1150, %v1195
  %v1212 = vsel %vm1180, %v1153, %v1196
  %v1213 = vsel %vm1181, %v1155, %v1197
  %v1214 = vsel %vm1182, %v1158, %v1198
  %v1215 = vsel %vm1183, %v1160, %v1199
  %v1216 = vsel %vm1184, %v1163, %v1200
  %v1217 = vsel %vm1185, %v1165, %v1201
  %v1218 = vsel %vm1186, %v1168, %v1202
  %v1219 = vsel %vm1187, %v1170, %v1203
  %v1220 = vld [vmem:[%s9] sm:$0x1]
  %v1222 = vperm.slane %v1220, 0
  %v1224 = vmul.f32 %v1204, %v1222
  %v1225 = vmul.f32 %v1205, %v1222
  %v1226 = vmul.f32 %v1206, %v1222
  %v1227 = vmul.f32 %v1207, %v1222
  %v1228 = vmul.f32 %v1208, %v1222
  %v1229 = vmul.f32 %v1209, %v1222
  %v1230 = vmul.f32 %v1210, %v1222
  %v1231 = vmul.f32 %v1211, %v1222
  %v1232 = vmul.f32 %v1212, %v1222
  %v1233 = vmul.f32 %v1213, %v1222
  %v1234 = vmul.f32 %v1214, %v1222
  %v1235 = vmul.f32 %v1215, %v1222
  %v1236 = vmul.f32 %v1216, %v1222
  %v1237 = vmul.f32 %v1217, %v1222
  %v1238 = vmul.f32 %v1218, %v1222
  %v1239 = vmul.f32 %v1219, %v1222
  %1240 = vadd.xlane.f32.xlu0 %v1224
  %v1241 = vpop.xlane.xlu0 %1240
  %1242 = vadd.xlane.f32.xlu0 %v1225
  %v1243 = vpop.xlane.xlu0 %1242
  %1244 = vadd.xlane.f32.xlu0 %v1226
  %v1245 = vpop.xlane.xlu0 %1244
  %1246 = vadd.xlane.f32.xlu0 %v1227
  %v1247 = vpop.xlane.xlu0 %1246
  %1248 = vadd.xlane.f32.xlu0 %v1228
  %v1249 = vpop.xlane.xlu0 %1248
  %1250 = vadd.xlane.f32.xlu0 %v1229
  %v1251 = vpop.xlane.xlu0 %1250
  %1252 = vadd.xlane.f32.xlu0 %v1230
  %v1253 = vpop.xlane.xlu0 %1252
  %1254 = vadd.xlane.f32.xlu0 %v1231
  %v1255 = vpop.xlane.xlu0 %1254
  %1256 = vadd.xlane.f32.xlu0 %v1232
  %v1257 = vpop.xlane.xlu0 %1256
  %1258 = vadd.xlane.f32.xlu0 %v1233
  %v1259 = vpop.xlane.xlu0 %1258
  %1260 = vadd.xlane.f32.xlu0 %v1234
  %v1261 = vpop.xlane.xlu0 %1260
  %1262 = vadd.xlane.f32.xlu0 %v1235
  %v1263 = vpop.xlane.xlu0 %1262
  %1264 = vadd.xlane.f32.xlu0 %v1236
  %v1265 = vpop.xlane.xlu0 %1264
  %1266 = vadd.xlane.f32.xlu0 %v1237
  %v1267 = vpop.xlane.xlu0 %1266
  %1268 = vadd.xlane.f32.xlu0 %v1238
  %v1269 = vpop.xlane.xlu0 %1268
  %1270 = vadd.xlane.f32.xlu0 %v1239
  %v1271 = vpop.xlane.xlu0 %1270
  %v1272 = vld [vmem:[#allocation2] sm:$0x1]
  %1274 = vset.pattern.permute.xlu0 0
  %1275 = vperm.xlu0 %1274, %v1272
  %v1276 = vpop.permute.xlu0 %1275
  %v1278 = vperm.slane %v1276, 0
  %v1279 = vadd.f32 %v1241, %v1278
  %v1280 = vadd.f32 %v1243, %v1278
  %v1281 = vadd.f32 %v1245, %v1278
  %v1282 = vadd.f32 %v1247, %v1278
  %v1283 = vadd.f32 %v1249, %v1278
  %v1284 = vadd.f32 %v1251, %v1278
  %v1285 = vadd.f32 %v1253, %v1278
  %v1286 = vadd.f32 %v1255, %v1278
  %v1287 = vadd.f32 %v1257, %v1278
  %v1288 = vadd.f32 %v1259, %v1278
  %v1289 = vadd.f32 %v1261, %v1278
  %v1290 = vadd.f32 %v1263, %v1278
  %v1291 = vadd.f32 %v1265, %v1278
  %v1292 = vadd.f32 %v1267, %v1278
  %v1293 = vadd.f32 %v1269, %v1278
  %v1294 = vadd.f32 %v1271, %v1278
  %v1311 = vlaneseq
  %v1312 = vand.u32 %v1311, 127
  %v1313 = vperm.slane %v1279, %v1312
  %v1314 = vadd.s32 %v1312, 4294967288
  %v1315 = vperm.slane %v1280, %v1314
  %vm1316 = vcmask 130112
  %v1317 = vsel %vm1316, %v1315, %v1313
  %v1318 = vadd.s32 %v1312, 4294967280
  %v1319 = vperm.slane %v1281, %v1318
  %vm1320 = vcmask 195712
  %v1321 = vsel %vm1320, %v1319, %v1317
  %v1322 = vadd.s32 %v1312, 4294967272
  %v1323 = vperm.slane %v1282, %v1322
  %vm1324 = vcmask 261312
  %v1325 = vsel %vm1324, %v1323, %v1321
  %v1326 = vadd.s32 %v1312, 4294967264
  %v1327 = vperm.slane %v1283, %v1326
  %vm1328 = vcmask 326912
  %v1329 = vsel %vm1328, %v1327, %v1325
  %v1330 = vadd.s32 %v1312, 4294967256
  %v1331 = vperm.slane %v1284, %v1330
  %vm1332 = vcmask 392512
  %v1333 = vsel %vm1332, %v1331, %v1329
  %v1334 = vadd.s32 %v1312, 4294967248
  %v1335 = vperm.slane %v1285, %v1334
  %vm1336 = vcmask 458112
  %v1337 = vsel %vm1336, %v1335, %v1333
  %v1338 = vadd.s32 %v1312, 4294967240
  %v1339 = vperm.slane %v1286, %v1338
  %vm1340 = vcmask 523712
  %v1341 = vsel %vm1340, %v1339, %v1337
  %v1342 = vadd.s32 %v1312, 4294967232
  %v1343 = vperm.slane %v1287, %v1342
  %vm1344 = vcmask 589312
  %v1345 = vsel %vm1344, %v1343, %v1341
  %v1346 = vadd.s32 %v1312, 4294967224
  %v1347 = vperm.slane %v1288, %v1346
  %vm1348 = vcmask 654912
  %v1349 = vsel %vm1348, %v1347, %v1345
  %v1350 = vadd.s32 %v1312, 4294967216
  %v1351 = vperm.slane %v1289, %v1350
  %vm1352 = vcmask 720512
  %v1353 = vsel %vm1352, %v1351, %v1349
  %v1354 = vadd.s32 %v1312, 4294967208
  %v1355 = vperm.slane %v1290, %v1354
  %vm1356 = vcmask 786112
  %v1357 = vsel %vm1356, %v1355, %v1353
  %v1358 = vadd.s32 %v1312, 4294967200
  %v1359 = vperm.slane %v1291, %v1358
  %vm1360 = vcmask 851712
  %v1361 = vsel %vm1360, %v1359, %v1357
  %v1362 = vadd.s32 %v1312, 4294967192
  %v1363 = vperm.slane %v1292, %v1362
  %vm1364 = vcmask 917312
  %v1365 = vsel %vm1364, %v1363, %v1361
  %v1366 = vadd.s32 %v1312, 4294967184
  %v1367 = vperm.slane %v1293, %v1366
  %vm1368 = vcmask 982912
  %v1369 = vsel %vm1368, %v1367, %v1365
  %v1370 = vadd.s32 %v1312, 4294967176
  %v1371 = vperm.slane %v1294, %v1370
  %vm1372 = vcmask 1048512
  %v1373 = vsel %vm1372, %v1371, %v1369
  %1375 = vst [vmem:[%s11] sm:$0x1] %v1373
  // Predicated region
  $region46: #{critic_forward.1} parent=0 // pred_check
    _
  $region47: #{critic_forward.1} parent=0 // pred_check_branch
    %1377 = sbr.rel (0) target = $region49
  $region48: #{critic_forward.1} parent=0 // pred_region
    _
  $region49: #{critic_forward.1} parent=0 // pred_fallthru
    _
  // Predicated region
  $region50: #{critic_forward.1} parent=0 // pred_check
    _
  $region51: #{critic_forward.1} parent=0 // pred_check_branch
    %1379 = sbr.rel (0) target = $region53
  $region52: #{critic_forward.1} parent=0 // pred_region
    _
  $region53: #{critic_forward.1} parent=0 // pred_fallthru
    _

</llo_original>
